<compile_context>
chip_gen: v7x
topology: tpu7x:2x2x1
jax: 0.10.0
libtpu: 0.0.40
codegen_flags: <defaults>
</compile_context>

<pallas_src>
import functools

import jax
import jax.numpy as jnp
from jax import lax
from jax.experimental import pallas as pl
from jax.experimental.pallas import tpu as pltpu


def _round_up(n, m):
    return ((n + m - 1) // m) * m


def net5_kernel(x_ref,
                w1_ref, b1_ref,
                w2_ref, b2_ref,
                w3_ref, b3_ref,
                w4_ref, b4_ref,
                w5_ref, b5_ref,
                wo_ref, bo_ref,
                o_ref,
                *, chunk, num_chunks):
    """Fused forward pass on one [TB, F] batch tile.

    Activations live as [hidden, chunk] (batch on lanes).  Each layer computes
    W @ h + b with W in PyTorch [out, in] layout and b as an [out, 1] column.
    The lane axis is processed in `chunk`-wide sub-slices to keep live vregs
    small while TB stays large.
    """

    def layer(h, w_ref, b_ref):
        y = jnp.dot(w_ref[...], h, preferred_element_type=jnp.float32)
        y = y + b_ref[...]            # [out, 1] broadcasts over lane/batch axis
        return jnp.maximum(y, 0.0)    # ReLU

    for c in range(num_chunks):       # static, small (<= TB/128) trip count
        col0 = c * chunk

        xc = x_ref[pl.ds(col0, chunk), :]                      # [chunk, F]
        # fc1: contract the feature axes of W [H, F] and x [chunk, F]
        # -> [H, chunk] transposed (lane-dense) activation, no explicit transpose.
        h = lax.dot_general(w1_ref[...], xc,
                            dimension_numbers=(((1,), (1,)), ((), ())),
                            preferred_element_type=jnp.float32)
        h = jnp.maximum(h + b1_ref[...], 0.0)                  # fc1 + relu

        h = layer(h, w2_ref, b2_ref)                           # fc2 + relu
        h = layer(h, w3_ref, b3_ref)                           # fc3 + relu
        h = layer(h, w4_ref, b4_ref)                           # fc4 + relu
        h = layer(h, w5_ref, b5_ref)                           # fc5 + relu
        h = layer(h, wo_ref, bo_ref)                           # output + relu

        o_ref[:, pl.ds(col0, chunk)] = h.astype(o_ref.dtype)   # [1, chunk] lane-dense


def net5_forward(x, params, *, tb=2048):
    """x: [B, n_features] float32.  params[name] = (W [out, in], b [out, 1]).

    Returns [B, 1] float32, matching the PyTorch module's output shape.
    """
    B, F = x.shape

    # Lane-aligned tile: round the requested tb up to 128, then cap it near
    # ceil(B/2) so the grid keeps >=2 tiles when the batch allows (v7x megacore).
    TB = min(_round_up(int(tb), 128),
             _round_up(max(1, -(-B // 2)), 128))
    num_tiles = pl.cdiv(B, TB)

    # In-kernel lane chunk: largest of {512, 256, 128} that divides TB.
    chunk = 128
    for cand in (512, 256, 128):
        if TB % cand == 0:
            chunk = cand
            break
    num_chunks = TB // chunk

    flat_args = [x.astype(jnp.float32)]
    # Contiguous [TB, F] HBM slab per grid step, streamed & double-buffered.
    in_specs = [pl.BlockSpec((TB, F), lambda i: (i, 0))]

    for name in ("fc1", "fc2", "fc3", "fc4", "fc5", "out"):
        w, b = params[name]                               # w: [out, in], b: [out, 1]
        flat_args += [w.astype(jnp.float32), b.astype(jnp.float32)]
        # Constant index_map -> weights/biases stay VMEM-resident across tiles.
        in_specs += [pl.BlockSpec(w.shape, lambda i: (0, 0)),
                     pl.BlockSpec(b.shape, lambda i: (0, 0))]

    out_t = pl.pallas_call(
        functools.partial(net5_kernel, chunk=chunk, num_chunks=num_chunks),
        out_shape=jax.ShapeDtypeStruct((1, B), jnp.float32),
        grid=(num_tiles,),
        in_specs=in_specs,
        out_specs=pl.BlockSpec((1, TB), lambda i: (0, i)),
        compiler_params=pltpu.CompilerParams(
            dimension_semantics=("parallel",)),   # megacore split on v7x
    )(*flat_args)

    return out_t.T                                         # [B, 1]


def init_params(key, n_features=20, nh=(20, 20, 20, 20, 20)):
    """PyTorch-style uniform(+-1/sqrt(fan_in)) init; W stored [out, in], b [out, 1]."""
    params = {}
    dims = [n_features] + list(nh) + [1]
    names = ["fc1", "fc2", "fc3", "fc4", "fc5", "out"]
    for i, name in enumerate(names):
        fan_in, fan_out = dims[i], dims[i + 1]
        key, kw, kb = jax.random.split(key, 3)
        bound = 1.0 / (fan_in ** 0.5)
        w = jax.random.uniform(kw, (fan_out, fan_in), jnp.float32, -bound, bound)
        b = jax.random.uniform(kb, (fan_out, 1), jnp.float32, -bound, bound)
        params[name] = (w, b)
    return params


def net5_reference(x, params):
    """Plain-JAX reference for correctness checking (eval-mode dropout)."""
    h = x
    for name in ("fc1", "fc2", "fc3", "fc4", "fc5", "out"):
        w, b = params[name]
        h = jnp.maximum(h @ w.T + b[:, 0], 0.0)
    return h


if __name__ == "__main__":
    key = jax.random.PRNGKey(0)
    kx1, kx2, kp = jax.random.split(key, 3)

    n_features = 20
    params = init_params(kp, n_features=n_features)

    # Small batch: single (partially-masked) tile.
    B1 = 8
    x1 = jax.random.normal(kx1, (B1, n_features), dtype=jnp.float32)
    out1 = jax.block_until_ready(net5_forward(x1, params))
    ref1 = net5_reference(x1, params)
    assert out1.shape == (B1, 1), out1.shape
    assert jnp.allclose(out1, ref1, atol=1e-5, rtol=1e-5), (
        f"small-batch max abs err {jnp.max(jnp.abs(out1 - ref1))}")

    # Moderate batch: exercises the >=2-tile grid (megacore split), in-kernel
    # lane chunking, and a partial last tile (B not a multiple of TB).
    B2 = 300
    x2 = jax.random.normal(kx2, (B2, n_features), dtype=jnp.float32)
    out2 = jax.block_until_ready(net5_forward(x2, params))
    ref2 = net5_reference(x2, params)
    assert out2.shape == (B2, 1), out2.shape
    assert jnp.allclose(out2, ref2, atol=1e-5, rtol=1e-5), (
        f"multi-tile max abs err {jnp.max(jnp.abs(out2 - ref2))}")

    print("KERNEL_OK")
</pallas_src>

<mosaic_0001>
module attributes {stable_mosaic.version = 11 : i64} {
  func.func @net5_kernel(%arg0: i32, %arg1: memref<128x20xf32, #tpu.memory_space<vmem>>, %arg2: memref<20x20xf32, #tpu.memory_space<vmem>>, %arg3: memref<20x1xf32, #tpu.memory_space<vmem>>, %arg4: memref<20x20xf32, #tpu.memory_space<vmem>>, %arg5: memref<20x1xf32, #tpu.memory_space<vmem>>, %arg6: memref<20x20xf32, #tpu.memory_space<vmem>>, %arg7: memref<20x1xf32, #tpu.memory_space<vmem>>, %arg8: memref<20x20xf32, #tpu.memory_space<vmem>>, %arg9: memref<20x1xf32, #tpu.memory_space<vmem>>, %arg10: memref<20x20xf32, #tpu.memory_space<vmem>>, %arg11: memref<20x1xf32, #tpu.memory_space<vmem>>, %arg12: memref<1x20xf32, #tpu.memory_space<vmem>>, %arg13: memref<1x1xf32, #tpu.memory_space<vmem>>, %arg14: memref<1x128xf32, #tpu.memory_space<vmem>>) attributes {dimension_semantics = [#tpu.dimension_semantics<parallel>], iteration_bounds = array<i64: 1>, scalar_prefetch = 0 : i64, scratch_operands = 0 : i64, tpu.core_type = #tpu.core_type<tc>, window_params = [{transform_indices = @transform_0, window_bounds = array<i64: 128, 20>}, {pipeline_mode = #tpu.pipeline_mode<synchronous>, transform_indices = @transform_1, window_bounds = array<i64: 20, 20>}, {pipeline_mode = #tpu.pipeline_mode<synchronous>, transform_indices = @transform_2, window_bounds = array<i64: 20, 1>}, {pipeline_mode = #tpu.pipeline_mode<synchronous>, transform_indices = @transform_3, window_bounds = array<i64: 20, 20>}, {pipeline_mode = #tpu.pipeline_mode<synchronous>, transform_indices = @transform_4, window_bounds = array<i64: 20, 1>}, {pipeline_mode = #tpu.pipeline_mode<synchronous>, transform_indices = @transform_5, window_bounds = array<i64: 20, 20>}, {pipeline_mode = #tpu.pipeline_mode<synchronous>, transform_indices = @transform_6, window_bounds = array<i64: 20, 1>}, {pipeline_mode = #tpu.pipeline_mode<synchronous>, transform_indices = @transform_7, window_bounds = array<i64: 20, 20>}, {pipeline_mode = #tpu.pipeline_mode<synchronous>, transform_indices = @transform_8, window_bounds = array<i64: 20, 1>}, {pipeline_mode = #tpu.pipeline_mode<synchronous>, transform_indices = @transform_9, window_bounds = array<i64: 20, 20>}, {pipeline_mode = #tpu.pipeline_mode<synchronous>, transform_indices = @transform_10, window_bounds = array<i64: 20, 1>}, {pipeline_mode = #tpu.pipeline_mode<synchronous>, transform_indices = @transform_11, window_bounds = array<i64: 1, 20>}, {pipeline_mode = #tpu.pipeline_mode<synchronous>, transform_indices = @transform_12, window_bounds = array<i64: 1, 1>}, {transform_indices = @transform_13, window_bounds = array<i64: 1, 128>}]} {
    %c0 = arith.constant 0 : index
    %c0_0 = arith.constant 0 : index
    %0 = vector.load %arg1[%c0, %c0_0] : memref<128x20xf32, #tpu.memory_space<vmem>>, vector<128x20xf32>
    %c0_1 = arith.constant 0 : index
    %c0_2 = arith.constant 0 : index
    %1 = vector.load %arg2[%c0_1, %c0_2] : memref<20x20xf32, #tpu.memory_space<vmem>>, vector<20x20xf32>
    %cst = arith.constant dense<0.000000e+00> : vector<20x128xf32>
    %2 = tpu.matmul %1, %0, %cst {dimension_numbers = #tpu.dot_dimension_numbers<[1], [1], [0], [0], [0, 0, 1, 0], [], []>} : vector<20x20xf32>, vector<128x20xf32>, vector<20x128xf32> -> vector<20x128xf32>
    %c0_3 = arith.constant 0 : index
    %c0_4 = arith.constant 0 : index
    %3 = vector.load %arg3[%c0_3, %c0_4] : memref<20x1xf32, #tpu.memory_space<vmem>>, vector<20x1xf32>
    %4 = vector.broadcast %3 : vector<20x1xf32> to vector<20x128xf32>
    %5 = arith.addf %2, %4 : vector<20x128xf32>
    %cst_5 = arith.constant 0.000000e+00 : f32
    %6 = vector.broadcast %cst_5 : f32 to vector<20x128xf32>
    %7 = arith.maximumf %5, %6 : vector<20x128xf32>
    %c0_6 = arith.constant 0 : index
    %c0_7 = arith.constant 0 : index
    %8 = vector.load %arg4[%c0_6, %c0_7] : memref<20x20xf32, #tpu.memory_space<vmem>>, vector<20x20xf32>
    %cst_8 = arith.constant dense<0.000000e+00> : vector<20x128xf32>
    %9 = tpu.matmul %8, %7, %cst_8 {dimension_numbers = #tpu.dot_dimension_numbers<[1], [0], [0], [1], [0, 0, 1, 1], [], []>} : vector<20x20xf32>, vector<20x128xf32>, vector<20x128xf32> -> vector<20x128xf32>
    %c0_9 = arith.constant 0 : index
    %c0_10 = arith.constant 0 : index
    %10 = vector.load %arg5[%c0_9, %c0_10] : memref<20x1xf32, #tpu.memory_space<vmem>>, vector<20x1xf32>
    %11 = vector.broadcast %10 : vector<20x1xf32> to vector<20x128xf32>
    %12 = arith.addf %9, %11 : vector<20x128xf32>
    %cst_11 = arith.constant 0.000000e+00 : f32
    %13 = vector.broadcast %cst_11 : f32 to vector<20x128xf32>
    %14 = arith.maximumf %12, %13 : vector<20x128xf32>
    %c0_12 = arith.constant 0 : index
    %c0_13 = arith.constant 0 : index
    %15 = vector.load %arg6[%c0_12, %c0_13] : memref<20x20xf32, #tpu.memory_space<vmem>>, vector<20x20xf32>
    %cst_14 = arith.constant dense<0.000000e+00> : vector<20x128xf32>
    %16 = tpu.matmul %15, %14, %cst_14 {dimension_numbers = #tpu.dot_dimension_numbers<[1], [0], [0], [1], [0, 0, 1, 1], [], []>} : vector<20x20xf32>, vector<20x128xf32>, vector<20x128xf32> -> vector<20x128xf32>
    %c0_15 = arith.constant 0 : index
    %c0_16 = arith.constant 0 : index
    %17 = vector.load %arg7[%c0_15, %c0_16] : memref<20x1xf32, #tpu.memory_space<vmem>>, vector<20x1xf32>
    %18 = vector.broadcast %17 : vector<20x1xf32> to vector<20x128xf32>
    %19 = arith.addf %16, %18 : vector<20x128xf32>
    %cst_17 = arith.constant 0.000000e+00 : f32
    %20 = vector.broadcast %cst_17 : f32 to vector<20x128xf32>
    %21 = arith.maximumf %19, %20 : vector<20x128xf32>
    %c0_18 = arith.constant 0 : index
    %c0_19 = arith.constant 0 : index
    %22 = vector.load %arg8[%c0_18, %c0_19] : memref<20x20xf32, #tpu.memory_space<vmem>>, vector<20x20xf32>
    %cst_20 = arith.constant dense<0.000000e+00> : vector<20x128xf32>
    %23 = tpu.matmul %22, %21, %cst_20 {dimension_numbers = #tpu.dot_dimension_numbers<[1], [0], [0], [1], [0, 0, 1, 1], [], []>} : vector<20x20xf32>, vector<20x128xf32>, vector<20x128xf32> -> vector<20x128xf32>
    %c0_21 = arith.constant 0 : index
    %c0_22 = arith.constant 0 : index
    %24 = vector.load %arg9[%c0_21, %c0_22] : memref<20x1xf32, #tpu.memory_space<vmem>>, vector<20x1xf32>
    %25 = vector.broadcast %24 : vector<20x1xf32> to vector<20x128xf32>
    %26 = arith.addf %23, %25 : vector<20x128xf32>
    %cst_23 = arith.constant 0.000000e+00 : f32
    %27 = vector.broadcast %cst_23 : f32 to vector<20x128xf32>
    %28 = arith.maximumf %26, %27 : vector<20x128xf32>
    %c0_24 = arith.constant 0 : index
    %c0_25 = arith.constant 0 : index
    %29 = vector.load %arg10[%c0_24, %c0_25] : memref<20x20xf32, #tpu.memory_space<vmem>>, vector<20x20xf32>
    %cst_26 = arith.constant dense<0.000000e+00> : vector<20x128xf32>
    %30 = tpu.matmul %29, %28, %cst_26 {dimension_numbers = #tpu.dot_dimension_numbers<[1], [0], [0], [1], [0, 0, 1, 1], [], []>} : vector<20x20xf32>, vector<20x128xf32>, vector<20x128xf32> -> vector<20x128xf32>
    %c0_27 = arith.constant 0 : index
    %c0_28 = arith.constant 0 : index
    %31 = vector.load %arg11[%c0_27, %c0_28] : memref<20x1xf32, #tpu.memory_space<vmem>>, vector<20x1xf32>
    %32 = vector.broadcast %31 : vector<20x1xf32> to vector<20x128xf32>
    %33 = arith.addf %30, %32 : vector<20x128xf32>
    %cst_29 = arith.constant 0.000000e+00 : f32
    %34 = vector.broadcast %cst_29 : f32 to vector<20x128xf32>
    %35 = arith.maximumf %33, %34 : vector<20x128xf32>
    %c0_30 = arith.constant 0 : index
    %c0_31 = arith.constant 0 : index
    %36 = vector.load %arg12[%c0_30, %c0_31] : memref<1x20xf32, #tpu.memory_space<vmem>>, vector<1x20xf32>
    %cst_32 = arith.constant dense<0.000000e+00> : vector<1x128xf32>
    %37 = tpu.matmul %36, %35, %cst_32 {dimension_numbers = #tpu.dot_dimension_numbers<[1], [0], [0], [1], [0, 0, 1, 1], [], []>} : vector<1x20xf32>, vector<20x128xf32>, vector<1x128xf32> -> vector<1x128xf32>
    %c0_33 = arith.constant 0 : index
    %c0_34 = arith.constant 0 : index
    %38 = vector.load %arg13[%c0_33, %c0_34] : memref<1x1xf32, #tpu.memory_space<vmem>>, vector<1x1xf32>
    %39 = vector.broadcast %38 : vector<1x1xf32> to vector<1x128xf32>
    %40 = arith.addf %37, %39 : vector<1x128xf32>
    %cst_35 = arith.constant 0.000000e+00 : f32
    %41 = vector.broadcast %cst_35 : f32 to vector<1x128xf32>
    %42 = arith.maximumf %40, %41 : vector<1x128xf32>
    %c0_36 = arith.constant 0 : index
    %c0_37 = arith.constant 0 : index
    %43 = vector.load %arg14[%c0_36, %c0_37] : memref<1x128xf32, #tpu.memory_space<vmem>>, vector<1x128xf32>
    tpu.vector_store %arg14[%c0_36, %c0_37], %42 {strides = array<i32>} : memref<1x128xf32, #tpu.memory_space<vmem>>, vector<1x128xf32>,
    return
  }
  func.func @transform_0(%arg0: i32) -> (i32, i32) {
    %c0_i32 = arith.constant 0 : i32
    %c0_i32_0 = arith.constant 0 : i32
    return %arg0, %c0_i32 : i32, i32
  }
  func.func @transform_1(%arg0: i32) -> (i32, i32) {
    %c0_i32 = arith.constant 0 : i32
    %c0_i32_0 = arith.constant 0 : i32
    %c0_i32_1 = arith.constant 0 : i32
    return %c0_i32, %c0_i32_0 : i32, i32
  }
  func.func @transform_2(%arg0: i32) -> (i32, i32) {
    %c0_i32 = arith.constant 0 : i32
    %c0_i32_0 = arith.constant 0 : i32
    %c0_i32_1 = arith.constant 0 : i32
    return %c0_i32, %c0_i32_0 : i32, i32
  }
  func.func @transform_3(%arg0: i32) -> (i32, i32) {
    %c0_i32 = arith.constant 0 : i32
    %c0_i32_0 = arith.constant 0 : i32
    %c0_i32_1 = arith.constant 0 : i32
    return %c0_i32, %c0_i32_0 : i32, i32
  }
  func.func @transform_4(%arg0: i32) -> (i32, i32) {
    %c0_i32 = arith.constant 0 : i32
    %c0_i32_0 = arith.constant 0 : i32
    %c0_i32_1 = arith.constant 0 : i32
    return %c0_i32, %c0_i32_0 : i32, i32
  }
  func.func @transform_5(%arg0: i32) -> (i32, i32) {
    %c0_i32 = arith.constant 0 : i32
    %c0_i32_0 = arith.constant 0 : i32
    %c0_i32_1 = arith.constant 0 : i32
    return %c0_i32, %c0_i32_0 : i32, i32
  }
  func.func @transform_6(%arg0: i32) -> (i32, i32) {
    %c0_i32 = arith.constant 0 : i32
    %c0_i32_0 = arith.constant 0 : i32
    %c0_i32_1 = arith.constant 0 : i32
    return %c0_i32, %c0_i32_0 : i32, i32
  }
  func.func @transform_7(%arg0: i32) -> (i32, i32) {
    %c0_i32 = arith.constant 0 : i32
    %c0_i32_0 = arith.constant 0 : i32
    %c0_i32_1 = arith.constant 0 : i32
    return %c0_i32, %c0_i32_0 : i32, i32
  }
  func.func @transform_8(%arg0: i32) -> (i32, i32) {
    %c0_i32 = arith.constant 0 : i32
    %c0_i32_0 = arith.constant 0 : i32
    %c0_i32_1 = arith.constant 0 : i32
    return %c0_i32, %c0_i32_0 : i32, i32
  }
  func.func @transform_9(%arg0: i32) -> (i32, i32) {
    %c0_i32 = arith.constant 0 : i32
    %c0_i32_0 = arith.constant 0 : i32
    %c0_i32_1 = arith.constant 0 : i32
    return %c0_i32, %c0_i32_0 : i32, i32
  }
  func.func @transform_10(%arg0: i32) -> (i32, i32) {
    %c0_i32 = arith.constant 0 : i32
    %c0_i32_0 = arith.constant 0 : i32
    %c0_i32_1 = arith.constant 0 : i32
    return %c0_i32, %c0_i32_0 : i32, i32
  }
  func.func @transform_11(%arg0: i32) -> (i32, i32) {
    %c0_i32 = arith.constant 0 : i32
    %c0_i32_0 = arith.constant 0 : i32
    %c0_i32_1 = arith.constant 0 : i32
    return %c0_i32, %c0_i32_0 : i32, i32
  }
  func.func @transform_12(%arg0: i32) -> (i32, i32) {
    %c0_i32 = arith.constant 0 : i32
    %c0_i32_0 = arith.constant 0 : i32
    %c0_i32_1 = arith.constant 0 : i32
    return %c0_i32, %c0_i32_0 : i32, i32
  }
  func.func @transform_13(%arg0: i32) -> (i32, i32) {
    %c0_i32 = arith.constant 0 : i32
    %c0_i32_0 = arith.constant 0 : i32
    return %c0_i32, %arg0 : i32, i32
  }
}

</mosaic_0001>

<llo_original>
// kernel: tpu_custom_call.1
$region0: #{tpu_custom_call.1}
  #allocation0 [shape = 'u32[]', space=smem, size = 0x4, offset = 0x4, fixed_abs, tag = 'smem constant byte address 0x4 - core index']
  #allocation1 [shape = 'u32[144,128]{1,0:T(1,128)}', space=vmem, size = 0x12000, scoped, tag = 'internal scratch']
  #allocation2 [shape = 'f32[1,1]{1,0:T(1,128)S(1)}', space=vmem, size = 0x200, scoped, tag = 'scoped memory for tpu_custom_call.1']
  %s0 = inlined_call_operand.vmem [shape: f32[8,20], index: 0, kind: input, shape index: {}]
  %s1 = inlined_call_operand.vmem [shape: f32[20,20], index: 1, kind: input, shape index: {}]
  %s2 = inlined_call_operand.vmem [shape: f32[20,1], index: 2, kind: input, shape index: {}]
  %s3 = inlined_call_operand.vmem [shape: f32[20,20], index: 3, kind: input, shape index: {}]
  %s4 = inlined_call_operand.vmem [shape: f32[20,1], index: 4, kind: input, shape index: {}]
  %s5 = inlined_call_operand.vmem [shape: f32[20,20], index: 5, kind: input, shape index: {}]
  %s6 = inlined_call_operand.vmem [shape: f32[20,1], index: 6, kind: input, shape index: {}]
  %s7 = inlined_call_operand.vmem [shape: f32[20,20], index: 7, kind: input, shape index: {}]
  %s8 = inlined_call_operand.vmem [shape: f32[20,1], index: 8, kind: input, shape index: {}]
  %s9 = inlined_call_operand.vmem [shape: f32[20,20], index: 9, kind: input, shape index: {}]
  %s10 = inlined_call_operand.vmem [shape: f32[20,1], index: 10, kind: input, shape index: {}]
  %s11 = inlined_call_operand.vmem [shape: f32[1,20], index: 11, kind: input, shape index: {}]
  %s12 = inlined_call_operand.<no memory space> [shape: f32[1,1], index: 12, kind: input, shape index: {}]
  %s13 = inlined_call_operand.hbm [shape: f32[1,8], index: 13, kind: output, shape index: {}]
  %s14 = sld [smem:[#allocation0]]
  $region62: #{tpu_custom_call.1} parent=0
    _
  %s16 = ssub.s32 1, %s14
  %s17 = scalar_select 0, %s16, %s14
  %v18 = vstv %s12
  %19 = vst [vmem:[#allocation2] sm:$0x1] %v18
  $region1: #{tpu_custom_call.1} parent=0
    #allocation3 [shape = 'u8[512]{0}', space=vmem, size = 0x400, scoped, tag = 'output window, operand 0, single buffered']
    #allocation4 [shape = 's32[1]{0}', space=sflag, size = 0x4, scoped, tag = 'scoped memory for tpu_custom_call.1']
    %20 = vsyncpa [#allocation4], 0
    // Predicated region
    $region2: #{tpu_custom_call.1} parent=1 // pred_check
      _
    $region3: #{tpu_custom_call.1} parent=1 // pred_check_branch
      %22 = sbr.rel (0) target = $region5
    $region4: #{tpu_custom_call.1} parent=1 // pred_region
      _
    $region5: #{tpu_custom_call.1} parent=1 // pred_fallthru
      _
    // Predicated region
    $region6: #{tpu_custom_call.1} parent=1 // pred_check
      _
    $region7: #{tpu_custom_call.1} parent=1 // pred_check_branch
      %24 = sbr.rel (0) target = $region9
    $region8: #{tpu_custom_call.1} parent=1 // pred_region
      _
    $region9: #{tpu_custom_call.1} parent=1 // pred_fallthru
      _
    // Predicated region
    $region10: #{tpu_custom_call.1} parent=1 // pred_check
      _
    $region11: #{tpu_custom_call.1} parent=1 // pred_check_branch
      %26 = sbr.rel (0) target = $region13
    $region12: #{tpu_custom_call.1} parent=1 // pred_region
      _
    $region13: #{tpu_custom_call.1} parent=1 // pred_fallthru
      _
    // Predicated region
    $region14: #{tpu_custom_call.1} parent=1 // pred_check
      _
    $region15: #{tpu_custom_call.1} parent=1 // pred_check_branch
      %28 = sbr.rel (0) target = $region17
    $region16: #{tpu_custom_call.1} parent=1 // pred_region
      _
    $region17: #{tpu_custom_call.1} parent=1 // pred_fallthru
      _
    // Predicated region
    $region18: #{tpu_custom_call.1} parent=1 // pred_check
      _
    $region19: #{tpu_custom_call.1} parent=1 // pred_check_branch
      %30 = sbr.rel (0) target = $region21
    $region20: #{tpu_custom_call.1} parent=1 // pred_region
      _
    $region21: #{tpu_custom_call.1} parent=1 // pred_fallthru
      _
    // Predicated region
    $region22: #{tpu_custom_call.1} parent=1 // pred_check
      _
    $region23: #{tpu_custom_call.1} parent=1 // pred_check_branch
      %32 = sbr.rel (0) target = $region25
    $region24: #{tpu_custom_call.1} parent=1 // pred_region
      _
    $region25: #{tpu_custom_call.1} parent=1 // pred_fallthru
      _
    // Predicated region
    $region26: #{tpu_custom_call.1} parent=1 // pred_check
      _
    $region27: #{tpu_custom_call.1} parent=1 // pred_check_branch
      %34 = sbr.rel (0) target = $region29
    $region28: #{tpu_custom_call.1} parent=1 // pred_region
      _
    $region29: #{tpu_custom_call.1} parent=1 // pred_fallthru
      _
    // Predicated region
    $region30: #{tpu_custom_call.1} parent=1 // pred_check
      _
    $region31: #{tpu_custom_call.1} parent=1 // pred_check_branch
      %36 = sbr.rel (0) target = $region33
    $region32: #{tpu_custom_call.1} parent=1 // pred_region
      _
    $region33: #{tpu_custom_call.1} parent=1 // pred_fallthru
      _
    // Predicated region
    $region34: #{tpu_custom_call.1} parent=1 // pred_check
      _
    $region35: #{tpu_custom_call.1} parent=1 // pred_check_branch
      %38 = sbr.rel (0) target = $region37
    $region36: #{tpu_custom_call.1} parent=1 // pred_region
      _
    $region37: #{tpu_custom_call.1} parent=1 // pred_fallthru
      _
    // Predicated region
    $region38: #{tpu_custom_call.1} parent=1 // pred_check
      _
    $region39: #{tpu_custom_call.1} parent=1 // pred_check_branch
      %40 = sbr.rel (0) target = $region41
    $region40: #{tpu_custom_call.1} parent=1 // pred_region
      _
    $region41: #{tpu_custom_call.1} parent=1 // pred_fallthru
      _
    // Predicated region
    $region42: #{tpu_custom_call.1} parent=1 // pred_check
      _
    $region43: #{tpu_custom_call.1} parent=1 // pred_check_branch
      %42 = sbr.rel (0) target = $region45
    $region44: #{tpu_custom_call.1} parent=1 // pred_region
      _
    $region45: #{tpu_custom_call.1} parent=1 // pred_fallthru
      _
    // Predicated region
    $region46: #{tpu_custom_call.1} parent=1 // pred_check
      _
    $region47: #{tpu_custom_call.1} parent=1 // pred_check_branch
      %44 = sbr.rel (0) target = $region49
    $region48: #{tpu_custom_call.1} parent=1 // pred_region
      _
    $region49: #{tpu_custom_call.1} parent=1 // pred_fallthru
      _
    // Predicated region
    $region50: #{tpu_custom_call.1} parent=1 // pred_check
      _
    $region51: #{tpu_custom_call.1} parent=1 // pred_check_branch
      %46 = sbr.rel (0) target = $region53
    $region52: #{tpu_custom_call.1} parent=1 // pred_region
      _
    $region53: #{tpu_custom_call.1} parent=1 // pred_fallthru
      _
    %v47 = vld [vmem:[%s0] sm:$0xff]
    %v48 = vld [vmem:[%s0 + $0x8] sm:$0xff]
    %v49 = vld [vmem:[%s0 + $0x10] sm:$0xff]
    %v50 = vld [vmem:[%s0 + $0x18] sm:$0xff]
    %v51 = vld [vmem:[%s0 + $0x20] sm:$0xff]
    %v52 = vld [vmem:[%s0 + $0x28] sm:$0xff]
    %v53 = vld [vmem:[%s0 + $0x30] sm:$0xff]
    %v54 = vld [vmem:[%s0 + $0x38] sm:$0xff]
    %v55 = vld [vmem:[%s0 + $0x40] sm:$0xff]
    %v56 = vld [vmem:[%s0 + $0x48] sm:$0xff]
    %v57 = vld [vmem:[%s0 + $0x50] sm:$0xff]
    %v58 = vld [vmem:[%s0 + $0x58] sm:$0xff]
    %v59 = vld [vmem:[%s0 + $0x60] sm:$0xff]
    %v60 = vld [vmem:[%s0 + $0x68] sm:$0xff]
    %v61 = vld [vmem:[%s0 + $0x70] sm:$0xff]
    %v62 = vld [vmem:[%s0 + $0x78] sm:$0xff]
    %v63 = vld [vmem:[%s1] sm:$0xff]
    %v64 = vld [vmem:[%s1 + $0x8] sm:$0xff]
    %v65 = vld [vmem:[%s1 + $0x10] sm:$0xf]
    %v66 = vld [vmem:[%s2] sm:$0xff]
    %v67 = vld [vmem:[%s2 + $0x8] sm:$0xff]
    %v68 = vld [vmem:[%s2 + $0x10] sm:$0xf]
    %70 = vset.pattern.permute.xlu0 0
    %71 = vperm.xlu0 %70, %v66
    %v72 = vpop.permute.xlu0 %71
    %75 = vset.pattern.permute.xlu0 0
    %76 = vperm.xlu0 %75, %v67
    %v77 = vpop.permute.xlu0 %76
    %80 = vset.pattern.permute.xlu0 0
    %81 = vperm.xlu0 %80, %v68
    %v82 = vpop.permute.xlu0 %81
    %vm84 = vcmask 162816
    %v86 = vsel %vm84, %v63, 0
    %v89 = vsel %vm84, %v64, 0
    %v92 = vsel %vm84, %v65, 0
    %v95 = vsel %vm84, %v47, 0
    %v98 = vsel %vm84, %v48, 0
    %v101 = vsel %vm84, %v49, 0
    %v104 = vsel %vm84, %v50, 0
    %v107 = vsel %vm84, %v51, 0
    %v110 = vsel %vm84, %v52, 0
    %v113 = vsel %vm84, %v53, 0
    %v116 = vsel %vm84, %v54, 0
    %v119 = vsel %vm84, %v55, 0
    %v122 = vsel %vm84, %v56, 0
    %v125 = vsel %vm84, %v57, 0
    %v128 = vsel %vm84, %v58, 0
    %v131 = vsel %vm84, %v59, 0
    %v134 = vsel %vm84, %v60, 0
    %v137 = vsel %vm84, %v61, 0
    %v140 = vsel %vm84, %v62, 0
    %142 = vmatprep.subr.mxu0 0.0
    %143 = vmatpush1.xpose.msra.mxu0 %v95
    %144 = vmatprep.subr.mxu0 0.0
    %145 = vmatpush1.xpose.msra.mxu0 %v98
    %146 = vmatprep.subr.mxu0 0.0
    %147 = vmatpush1.xpose.msra.mxu0 %v101
    %148 = vmatprep.subr.mxu0 0.0
    %149 = vmatpush1.xpose.msra.mxu0 %v104
    %150 = vmatprep.subr.mxu0 0.0
    %151 = vmatpush1.xpose.msra.mxu0 %v107
    %152 = vmatprep.subr.mxu0 0.0
    %153 = vmatpush1.xpose.msra.mxu0 %v110
    %154 = vmatprep.subr.mxu0 0.0
    %155 = vmatpush1.xpose.msra.mxu0 %v113
    %156 = vmatprep.subr.mxu0 0.0
    %157 = vmatpush1.xpose.msra.mxu0 %v116
    %158 = vmatprep.subr.mxu0 0.0
    %159 = vmatpush1.xpose.msra.mxu0 %v119
    %160 = vmatprep.subr.mxu0 0.0
    %161 = vmatpush1.xpose.msra.mxu0 %v122
    %162 = vmatprep.subr.mxu0 0.0
    %163 = vmatpush1.xpose.msra.mxu0 %v125
    %164 = vmatprep.subr.mxu0 0.0
    %165 = vmatpush1.xpose.msra.mxu0 %v128
    %166 = vmatprep.subr.mxu0 0.0
    %167 = vmatpush1.xpose.msra.mxu0 %v131
    %168 = vmatprep.subr.mxu0 0.0
    %169 = vmatpush1.xpose.msra.mxu0 %v134
    %170 = vmatprep.subr.mxu0 0.0
    %171 = vmatpush1.xpose.msra.mxu0 %v137
    %172 = vmatprep.subr.mxu0 0.0
    %173 = vmatpush1.xpose.msra.mxu0 %v140
    %174 = vmatprep.subr.mxu0 0.0
    %175 = vmatpush1.xpose.msra.mxu0 0.0
    %176 = vmatprep.subr.mxu0 0.0
    %177 = vmatpush1.xpose.msra.mxu0 0.0
    %178 = vmatprep.subr.mxu0 0.0
    %179 = vmatpush1.xpose.msra.mxu0 0.0
    %180 = vmatprep.subr.mxu0 0.0
    %181 = vmatpush1.xpose.msra.mxu0 0.0
    %182 = vmatprep.subr.mxu0 0.0
    %183 = vmatpush1.xpose.msra.mxu0 0.0
    %184 = vmatprep.subr.mxu0 0.0
    %185 = vmatpush1.xpose.msra.mxu0 0.0
    %186 = vmatprep.subr.mxu0 0.0
    %187 = vmatpush1.xpose.msra.mxu0 0.0
    %188 = vmatprep.subr.mxu0 0.0
    %189 = vmatpush1.xpose.msra.mxu0 0.0
    %190 = vmatprep.subr.mxu0 0.0
    %191 = vmatpush1.xpose.msra.mxu0 0.0
    %192 = vmatprep.subr.mxu0 0.0
    %193 = vmatpush1.xpose.msra.mxu0 0.0
    %194 = vmatprep.subr.mxu0 0.0
    %195 = vmatpush1.xpose.msra.mxu0 0.0
    %196 = vmatprep.subr.mxu0 0.0
    %197 = vmatpush1.xpose.msra.mxu0 0.0
    %198 = vmatprep.subr.mxu0 0.0
    %199 = vmatpush1.xpose.msra.mxu0 0.0
    %200 = vmatprep.subr.mxu0 0.0
    %201 = vmatpush1.xpose.msra.mxu0 0.0
    %202 = vmatprep.subr.mxu0 0.0
    %203 = vmatpush1.xpose.msra.mxu0 0.0
    %204 = vmatprep.subr.mxu0 0.0
    %205 = vmatpush1.xpose.msra.mxu0 0.0
    %206 = vmatprep.mubr.f32.mxu0 0.0
    %207 = vmatmul.mubr.f32.gmra.mrb[0].mxu0 %v86
    %v208 = vpop.f32.mrb[0].mxu0
    %v209 = vadd.f32 %v72, %v208
    %v210 = vpop.f32.mrb[0].mxu0
    %211 = vmatprep.mubr.f32.mxu0 0.0
    %212 = vmatmul.mubr.f32.gmra.mrb[0].mxu0 %v89
    %v213 = vpop.f32.mrb[0].mxu0
    %v214 = vadd.f32 %v77, %v213
    %v215 = vpop.f32.mrb[0].mxu0
    %216 = vmatprep.mubr.f32.mxu0 0.0
    %217 = vmatmul.mubr.f32.gmra.mrb[0].mxu0 %v92
    %v218 = vpop.f32.mrb[0].mxu0
    %v219 = vadd.f32 %v82, %v218
    %v220 = vpop.f32.mrb[0].mxu0
    %221 = vdwg.mxu0
    %v222 = vmax.f32 %v209, 0.0
    %v223 = vmax.f32 %v214, 0.0
    %v224 = vmax.f32 %v219, 0.0
    %v225 = vld [vmem:[%s3] sm:$0xff]
    %v226 = vld [vmem:[%s3 + $0x8] sm:$0xff]
    %v227 = vld [vmem:[%s3 + $0x10] sm:$0xf]
    %v228 = vld [vmem:[%s4] sm:$0xff]
    %v229 = vld [vmem:[%s4 + $0x8] sm:$0xff]
    %v230 = vld [vmem:[%s4 + $0x10] sm:$0xf]
    %232 = vset.pattern.permute.xlu0 0
    %233 = vperm.xlu0 %232, %v228
    %v234 = vpop.permute.xlu0 %233
    %237 = vset.pattern.permute.xlu0 0
    %238 = vperm.xlu0 %237, %v229
    %v239 = vpop.permute.xlu0 %238
    %242 = vset.pattern.permute.xlu0 0
    %243 = vperm.xlu0 %242, %v230
    %v244 = vpop.permute.xlu0 %243
    %v247 = vsel %vm84, %v225, 0
    %v250 = vsel %vm84, %v226, 0
    %v253 = vsel %vm84, %v227, 0
    %vm255 = vcmask 1043456
    %v257 = vsel %vm255, %v224, 0
    %259 = vmatprep.subr.mxu0 0.0
    %260 = vmatpush1.msra.mxu0 %v222
    %261 = vmatprep.subr.mxu0 0.0
    %262 = vmatpush1.msra.mxu0 %v223
    %263 = vmatprep.subr.mxu0 0.0
    %264 = vmatpush1.msra.mxu0 %v257
    %265 = vmatprep.subr.mxu0 0.0
    %266 = vmatpush1.msra.mxu0 0.0
    %267 = vmatprep.subr.mxu0 0.0
    %268 = vmatpush1.msra.mxu0 0.0
    %269 = vmatprep.subr.mxu0 0.0
    %270 = vmatpush1.msra.mxu0 0.0
    %271 = vmatprep.subr.mxu0 0.0
    %272 = vmatpush1.msra.mxu0 0.0
    %273 = vmatprep.subr.mxu0 0.0
    %274 = vmatpush1.msra.mxu0 0.0
    %275 = vmatprep.subr.mxu0 0.0
    %276 = vmatpush1.msra.mxu0 0.0
    %277 = vmatprep.subr.mxu0 0.0
    %278 = vmatpush1.msra.mxu0 0.0
    %279 = vmatprep.subr.mxu0 0.0
    %280 = vmatpush1.msra.mxu0 0.0
    %281 = vmatprep.subr.mxu0 0.0
    %282 = vmatpush1.msra.mxu0 0.0
    %283 = vmatprep.subr.mxu0 0.0
    %284 = vmatpush1.msra.mxu0 0.0
    %285 = vmatprep.subr.mxu0 0.0
    %286 = vmatpush1.msra.mxu0 0.0
    %287 = vmatprep.subr.mxu0 0.0
    %288 = vmatpush1.msra.mxu0 0.0
    %289 = vmatprep.subr.mxu0 0.0
    %290 = vmatpush1.msra.mxu0 0.0
    %291 = vmatprep.subr.mxu0 0.0
    %292 = vmatpush1.msra.mxu0 0.0
    %293 = vmatprep.subr.mxu0 0.0
    %294 = vmatpush1.msra.mxu0 0.0
    %295 = vmatprep.subr.mxu0 0.0
    %296 = vmatpush1.msra.mxu0 0.0
    %297 = vmatprep.subr.mxu0 0.0
    %298 = vmatpush1.msra.mxu0 0.0
    %299 = vmatprep.subr.mxu0 0.0
    %300 = vmatpush1.msra.mxu0 0.0
    %301 = vmatprep.subr.mxu0 0.0
    %302 = vmatpush1.msra.mxu0 0.0
    %303 = vmatprep.subr.mxu0 0.0
    %304 = vmatpush1.msra.mxu0 0.0
    %305 = vmatprep.subr.mxu0 0.0
    %306 = vmatpush1.msra.mxu0 0.0
    %307 = vmatprep.subr.mxu0 0.0
    %308 = vmatpush1.msra.mxu0 0.0
    %309 = vmatprep.subr.mxu0 0.0
    %310 = vmatpush1.msra.mxu0 0.0
    %311 = vmatprep.subr.mxu0 0.0
    %312 = vmatpush1.msra.mxu0 0.0
    %313 = vmatprep.subr.mxu0 0.0
    %314 = vmatpush1.msra.mxu0 0.0
    %315 = vmatprep.subr.mxu0 0.0
    %316 = vmatpush1.msra.mxu0 0.0
    %317 = vmatprep.subr.mxu0 0.0
    %318 = vmatpush1.msra.mxu0 0.0
    %319 = vmatprep.subr.mxu0 0.0
    %320 = vmatpush1.msra.mxu0 0.0
    %321 = vmatprep.subr.mxu0 0.0
    %322 = vmatpush1.msra.mxu0 0.0
    %323 = vmatprep.mubr.f32.mxu0 0.0
    %324 = vmatmul.mubr.f32.gmra.mrb[0].mxu0 %v247
    %v325 = vpop.f32.mrb[0].mxu0
    %v326 = vadd.f32 %v234, %v325
    %v327 = vpop.f32.mrb[0].mxu0
    %328 = vmatprep.mubr.f32.mxu0 0.0
    %329 = vmatmul.mubr.f32.gmra.mrb[0].mxu0 %v250
    %v330 = vpop.f32.mrb[0].mxu0
    %v331 = vadd.f32 %v239, %v330
    %v332 = vpop.f32.mrb[0].mxu0
    %333 = vmatprep.mubr.f32.mxu0 0.0
    %334 = vmatmul.mubr.f32.gmra.mrb[0].mxu0 %v253
    %v335 = vpop.f32.mrb[0].mxu0
    %v336 = vadd.f32 %v244, %v335
    %v337 = vpop.f32.mrb[0].mxu0
    %338 = vdwg.mxu0
    %v339 = vmax.f32 %v326, 0.0
    %v340 = vmax.f32 %v331, 0.0
    %v341 = vmax.f32 %v336, 0.0
    %v342 = vld [vmem:[%s5] sm:$0xff]
    %v343 = vld [vmem:[%s5 + $0x8] sm:$0xff]
    %v344 = vld [vmem:[%s5 + $0x10] sm:$0xf]
    %v345 = vld [vmem:[%s6] sm:$0xff]
    %v346 = vld [vmem:[%s6 + $0x8] sm:$0xff]
    %v347 = vld [vmem:[%s6 + $0x10] sm:$0xf]
    %349 = vset.pattern.permute.xlu0 0
    %350 = vperm.xlu0 %349, %v345
    %v351 = vpop.permute.xlu0 %350
    %354 = vset.pattern.permute.xlu0 0
    %355 = vperm.xlu0 %354, %v346
    %v356 = vpop.permute.xlu0 %355
    %359 = vset.pattern.permute.xlu0 0
    %360 = vperm.xlu0 %359, %v347
    %v361 = vpop.permute.xlu0 %360
    %v364 = vsel %vm84, %v342, 0
    %v367 = vsel %vm84, %v343, 0
    %v370 = vsel %vm84, %v344, 0
    %v373 = vsel %vm255, %v341, 0
    %375 = vmatprep.subr.mxu0 0.0
    %376 = vmatpush1.msra.mxu0 %v339
    %377 = vmatprep.subr.mxu0 0.0
    %378 = vmatpush1.msra.mxu0 %v340
    %379 = vmatprep.subr.mxu0 0.0
    %380 = vmatpush1.msra.mxu0 %v373
    %381 = vmatprep.subr.mxu0 0.0
    %382 = vmatpush1.msra.mxu0 0.0
    %383 = vmatprep.subr.mxu0 0.0
    %384 = vmatpush1.msra.mxu0 0.0
    %385 = vmatprep.subr.mxu0 0.0
    %386 = vmatpush1.msra.mxu0 0.0
    %387 = vmatprep.subr.mxu0 0.0
    %388 = vmatpush1.msra.mxu0 0.0
    %389 = vmatprep.subr.mxu0 0.0
    %390 = vmatpush1.msra.mxu0 0.0
    %391 = vmatprep.subr.mxu0 0.0
    %392 = vmatpush1.msra.mxu0 0.0
    %393 = vmatprep.subr.mxu0 0.0
    %394 = vmatpush1.msra.mxu0 0.0
    %395 = vmatprep.subr.mxu0 0.0
    %396 = vmatpush1.msra.mxu0 0.0
    %397 = vmatprep.subr.mxu0 0.0
    %398 = vmatpush1.msra.mxu0 0.0
    %399 = vmatprep.subr.mxu0 0.0
    %400 = vmatpush1.msra.mxu0 0.0
    %401 = vmatprep.subr.mxu0 0.0
    %402 = vmatpush1.msra.mxu0 0.0
    %403 = vmatprep.subr.mxu0 0.0
    %404 = vmatpush1.msra.mxu0 0.0
    %405 = vmatprep.subr.mxu0 0.0
    %406 = vmatpush1.msra.mxu0 0.0
    %407 = vmatprep.subr.mxu0 0.0
    %408 = vmatpush1.msra.mxu0 0.0
    %409 = vmatprep.subr.mxu0 0.0
    %410 = vmatpush1.msra.mxu0 0.0
    %411 = vmatprep.subr.mxu0 0.0
    %412 = vmatpush1.msra.mxu0 0.0
    %413 = vmatprep.subr.mxu0 0.0
    %414 = vmatpush1.msra.mxu0 0.0
    %415 = vmatprep.subr.mxu0 0.0
    %416 = vmatpush1.msra.mxu0 0.0
    %417 = vmatprep.subr.mxu0 0.0
    %418 = vmatpush1.msra.mxu0 0.0
    %419 = vmatprep.subr.mxu0 0.0
    %420 = vmatpush1.msra.mxu0 0.0
    %421 = vmatprep.subr.mxu0 0.0
    %422 = vmatpush1.msra.mxu0 0.0
    %423 = vmatprep.subr.mxu0 0.0
    %424 = vmatpush1.msra.mxu0 0.0
    %425 = vmatprep.subr.mxu0 0.0
    %426 = vmatpush1.msra.mxu0 0.0
    %427 = vmatprep.subr.mxu0 0.0
    %428 = vmatpush1.msra.mxu0 0.0
    %429 = vmatprep.subr.mxu0 0.0
    %430 = vmatpush1.msra.mxu0 0.0
    %431 = vmatprep.subr.mxu0 0.0
    %432 = vmatpush1.msra.mxu0 0.0
    %433 = vmatprep.subr.mxu0 0.0
    %434 = vmatpush1.msra.mxu0 0.0
    %435 = vmatprep.subr.mxu0 0.0
    %436 = vmatpush1.msra.mxu0 0.0
    %437 = vmatprep.subr.mxu0 0.0
    %438 = vmatpush1.msra.mxu0 0.0
    %439 = vmatprep.mubr.f32.mxu0 0.0
    %440 = vmatmul.mubr.f32.gmra.mrb[0].mxu0 %v364
    %v441 = vpop.f32.mrb[0].mxu0
    %v442 = vadd.f32 %v351, %v441
    %v443 = vpop.f32.mrb[0].mxu0
    %444 = vmatprep.mubr.f32.mxu0 0.0
    %445 = vmatmul.mubr.f32.gmra.mrb[0].mxu0 %v367
    %v446 = vpop.f32.mrb[0].mxu0
    %v447 = vadd.f32 %v356, %v446
    %v448 = vpop.f32.mrb[0].mxu0
    %449 = vmatprep.mubr.f32.mxu0 0.0
    %450 = vmatmul.mubr.f32.gmra.mrb[0].mxu0 %v370
    %v451 = vpop.f32.mrb[0].mxu0
    %v452 = vadd.f32 %v361, %v451
    %v453 = vpop.f32.mrb[0].mxu0
    %454 = vdwg.mxu0
    %v455 = vmax.f32 %v442, 0.0
    %v456 = vmax.f32 %v447, 0.0
    %v457 = vmax.f32 %v452, 0.0
    %v458 = vld [vmem:[%s7] sm:$0xff]
    %v459 = vld [vmem:[%s7 + $0x8] sm:$0xff]
    %v460 = vld [vmem:[%s7 + $0x10] sm:$0xf]
    %v461 = vld [vmem:[%s8] sm:$0xff]
    %v462 = vld [vmem:[%s8 + $0x8] sm:$0xff]
    %v463 = vld [vmem:[%s8 + $0x10] sm:$0xf]
    %465 = vset.pattern.permute.xlu0 0
    %466 = vperm.xlu0 %465, %v461
    %v467 = vpop.permute.xlu0 %466
    %470 = vset.pattern.permute.xlu0 0
    %471 = vperm.xlu0 %470, %v462
    %v472 = vpop.permute.xlu0 %471
    %475 = vset.pattern.permute.xlu0 0
    %476 = vperm.xlu0 %475, %v463
    %v477 = vpop.permute.xlu0 %476
    %v480 = vsel %vm84, %v458, 0
    %v483 = vsel %vm84, %v459, 0
    %v486 = vsel %vm84, %v460, 0
    %v489 = vsel %vm255, %v457, 0
    %491 = vmatprep.subr.mxu0 0.0
    %492 = vmatpush1.msra.mxu0 %v455
    %493 = vmatprep.subr.mxu0 0.0
    %494 = vmatpush1.msra.mxu0 %v456
    %495 = vmatprep.subr.mxu0 0.0
    %496 = vmatpush1.msra.mxu0 %v489
    %497 = vmatprep.subr.mxu0 0.0
    %498 = vmatpush1.msra.mxu0 0.0
    %499 = vmatprep.subr.mxu0 0.0
    %500 = vmatpush1.msra.mxu0 0.0
    %501 = vmatprep.subr.mxu0 0.0
    %502 = vmatpush1.msra.mxu0 0.0
    %503 = vmatprep.subr.mxu0 0.0
    %504 = vmatpush1.msra.mxu0 0.0
    %505 = vmatprep.subr.mxu0 0.0
    %506 = vmatpush1.msra.mxu0 0.0
    %507 = vmatprep.subr.mxu0 0.0
    %508 = vmatpush1.msra.mxu0 0.0
    %509 = vmatprep.subr.mxu0 0.0
    %510 = vmatpush1.msra.mxu0 0.0
    %511 = vmatprep.subr.mxu0 0.0
    %512 = vmatpush1.msra.mxu0 0.0
    %513 = vmatprep.subr.mxu0 0.0
    %514 = vmatpush1.msra.mxu0 0.0
    %515 = vmatprep.subr.mxu0 0.0
    %516 = vmatpush1.msra.mxu0 0.0
    %517 = vmatprep.subr.mxu0 0.0
    %518 = vmatpush1.msra.mxu0 0.0
    %519 = vmatprep.subr.mxu0 0.0
    %520 = vmatpush1.msra.mxu0 0.0
    %521 = vmatprep.subr.mxu0 0.0
    %522 = vmatpush1.msra.mxu0 0.0
    %523 = vmatprep.subr.mxu0 0.0
    %524 = vmatpush1.msra.mxu0 0.0
    %525 = vmatprep.subr.mxu0 0.0
    %526 = vmatpush1.msra.mxu0 0.0
    %527 = vmatprep.subr.mxu0 0.0
    %528 = vmatpush1.msra.mxu0 0.0
    %529 = vmatprep.subr.mxu0 0.0
    %530 = vmatpush1.msra.mxu0 0.0
    %531 = vmatprep.subr.mxu0 0.0
    %532 = vmatpush1.msra.mxu0 0.0
    %533 = vmatprep.subr.mxu0 0.0
    %534 = vmatpush1.msra.mxu0 0.0
    %535 = vmatprep.subr.mxu0 0.0
    %536 = vmatpush1.msra.mxu0 0.0
    %537 = vmatprep.subr.mxu0 0.0
    %538 = vmatpush1.msra.mxu0 0.0
    %539 = vmatprep.subr.mxu0 0.0
    %540 = vmatpush1.msra.mxu0 0.0
    %541 = vmatprep.subr.mxu0 0.0
    %542 = vmatpush1.msra.mxu0 0.0
    %543 = vmatprep.subr.mxu0 0.0
    %544 = vmatpush1.msra.mxu0 0.0
    %545 = vmatprep.subr.mxu0 0.0
    %546 = vmatpush1.msra.mxu0 0.0
    %547 = vmatprep.subr.mxu0 0.0
    %548 = vmatpush1.msra.mxu0 0.0
    %549 = vmatprep.subr.mxu0 0.0
    %550 = vmatpush1.msra.mxu0 0.0
    %551 = vmatprep.subr.mxu0 0.0
    %552 = vmatpush1.msra.mxu0 0.0
    %553 = vmatprep.subr.mxu0 0.0
    %554 = vmatpush1.msra.mxu0 0.0
    %555 = vmatprep.mubr.f32.mxu0 0.0
    %556 = vmatmul.mubr.f32.gmra.mrb[0].mxu0 %v480
    %v557 = vpop.f32.mrb[0].mxu0
    %v558 = vadd.f32 %v467, %v557
    %v559 = vpop.f32.mrb[0].mxu0
    %560 = vmatprep.mubr.f32.mxu0 0.0
    %561 = vmatmul.mubr.f32.gmra.mrb[0].mxu0 %v483
    %v562 = vpop.f32.mrb[0].mxu0
    %v563 = vadd.f32 %v472, %v562
    %v564 = vpop.f32.mrb[0].mxu0
    %565 = vmatprep.mubr.f32.mxu0 0.0
    %566 = vmatmul.mubr.f32.gmra.mrb[0].mxu0 %v486
    %v567 = vpop.f32.mrb[0].mxu0
    %v568 = vadd.f32 %v477, %v567
    %v569 = vpop.f32.mrb[0].mxu0
    %570 = vdwg.mxu0
    %v571 = vmax.f32 %v558, 0.0
    %v572 = vmax.f32 %v563, 0.0
    %v573 = vmax.f32 %v568, 0.0
    %v574 = vld [vmem:[%s9] sm:$0xff]
    %v575 = vld [vmem:[%s9 + $0x8] sm:$0xff]
    %v576 = vld [vmem:[%s9 + $0x10] sm:$0xf]
    %v577 = vld [vmem:[%s10] sm:$0xff]
    %v578 = vld [vmem:[%s10 + $0x8] sm:$0xff]
    %v579 = vld [vmem:[%s10 + $0x10] sm:$0xf]
    %581 = vset.pattern.permute.xlu0 0
    %582 = vperm.xlu0 %581, %v577
    %v583 = vpop.permute.xlu0 %582
    %586 = vset.pattern.permute.xlu0 0
    %587 = vperm.xlu0 %586, %v578
    %v588 = vpop.permute.xlu0 %587
    %591 = vset.pattern.permute.xlu0 0
    %592 = vperm.xlu0 %591, %v579
    %v593 = vpop.permute.xlu0 %592
    %v596 = vsel %vm84, %v574, 0
    %v599 = vsel %vm84, %v575, 0
    %v602 = vsel %vm84, %v576, 0
    %v605 = vsel %vm255, %v573, 0
    %607 = vmatprep.subr.mxu0 0.0
    %608 = vmatpush1.msra.mxu0 %v571
    %609 = vmatprep.subr.mxu0 0.0
    %610 = vmatpush1.msra.mxu0 %v572
    %611 = vmatprep.subr.mxu0 0.0
    %612 = vmatpush1.msra.mxu0 %v605
    %613 = vmatprep.subr.mxu0 0.0
    %614 = vmatpush1.msra.mxu0 0.0
    %615 = vmatprep.subr.mxu0 0.0
    %616 = vmatpush1.msra.mxu0 0.0
    %617 = vmatprep.subr.mxu0 0.0
    %618 = vmatpush1.msra.mxu0 0.0
    %619 = vmatprep.subr.mxu0 0.0
    %620 = vmatpush1.msra.mxu0 0.0
    %621 = vmatprep.subr.mxu0 0.0
    %622 = vmatpush1.msra.mxu0 0.0
    %623 = vmatprep.subr.mxu0 0.0
    %624 = vmatpush1.msra.mxu0 0.0
    %625 = vmatprep.subr.mxu0 0.0
    %626 = vmatpush1.msra.mxu0 0.0
    %627 = vmatprep.subr.mxu0 0.0
    %628 = vmatpush1.msra.mxu0 0.0
    %629 = vmatprep.subr.mxu0 0.0
    %630 = vmatpush1.msra.mxu0 0.0
    %631 = vmatprep.subr.mxu0 0.0
    %632 = vmatpush1.msra.mxu0 0.0
    %633 = vmatprep.subr.mxu0 0.0
    %634 = vmatpush1.msra.mxu0 0.0
    %635 = vmatprep.subr.mxu0 0.0
    %636 = vmatpush1.msra.mxu0 0.0
    %637 = vmatprep.subr.mxu0 0.0
    %638 = vmatpush1.msra.mxu0 0.0
    %639 = vmatprep.subr.mxu0 0.0
    %640 = vmatpush1.msra.mxu0 0.0
    %641 = vmatprep.subr.mxu0 0.0
    %642 = vmatpush1.msra.mxu0 0.0
    %643 = vmatprep.subr.mxu0 0.0
    %644 = vmatpush1.msra.mxu0 0.0
    %645 = vmatprep.subr.mxu0 0.0
    %646 = vmatpush1.msra.mxu0 0.0
    %647 = vmatprep.subr.mxu0 0.0
    %648 = vmatpush1.msra.mxu0 0.0
    %649 = vmatprep.subr.mxu0 0.0
    %650 = vmatpush1.msra.mxu0 0.0
    %651 = vmatprep.subr.mxu0 0.0
    %652 = vmatpush1.msra.mxu0 0.0
    %653 = vmatprep.subr.mxu0 0.0
    %654 = vmatpush1.msra.mxu0 0.0
    %655 = vmatprep.subr.mxu0 0.0
    %656 = vmatpush1.msra.mxu0 0.0
    %657 = vmatprep.subr.mxu0 0.0
    %658 = vmatpush1.msra.mxu0 0.0
    %659 = vmatprep.subr.mxu0 0.0
    %660 = vmatpush1.msra.mxu0 0.0
    %661 = vmatprep.subr.mxu0 0.0
    %662 = vmatpush1.msra.mxu0 0.0
    %663 = vmatprep.subr.mxu0 0.0
    %664 = vmatpush1.msra.mxu0 0.0
    %665 = vmatprep.subr.mxu0 0.0
    %666 = vmatpush1.msra.mxu0 0.0
    %667 = vmatprep.subr.mxu0 0.0
    %668 = vmatpush1.msra.mxu0 0.0
    %669 = vmatprep.subr.mxu0 0.0
    %670 = vmatpush1.msra.mxu0 0.0
    %671 = vmatprep.mubr.f32.mxu0 0.0
    %672 = vmatmul.mubr.f32.gmra.mrb[0].mxu0 %v596
    %v673 = vpop.f32.mrb[0].mxu0
    %v674 = vadd.f32 %v583, %v673
    %v675 = vpop.f32.mrb[0].mxu0
    %676 = vmatprep.mubr.f32.mxu0 0.0
    %677 = vmatmul.mubr.f32.gmra.mrb[0].mxu0 %v599
    %v678 = vpop.f32.mrb[0].mxu0
    %v679 = vadd.f32 %v588, %v678
    %v680 = vpop.f32.mrb[0].mxu0
    %681 = vmatprep.mubr.f32.mxu0 0.0
    %682 = vmatmul.mubr.f32.gmra.mrb[0].mxu0 %v602
    %v683 = vpop.f32.mrb[0].mxu0
    %v684 = vadd.f32 %v593, %v683
    %v685 = vpop.f32.mrb[0].mxu0
    %686 = vdwg.mxu0
    %v687 = vmax.f32 %v674, 0.0
    %v688 = vmax.f32 %v679, 0.0
    %v689 = vmax.f32 %v684, 0.0
    %v690 = vld [vmem:[%s11] sm:$0x1]
    %v691 = vld [vmem:[#allocation2] sm:$0x1]
    %693 = vset.pattern.permute.xlu0 0
    %694 = vperm.xlu0 %693, %v691
    %v695 = vpop.permute.xlu0 %694
    %v697 = vlaneseq
    %v698 = vshrl.u32 %v697, 7
    %v699 = vsub.s32 0, %v698
    %v700 = vrot.slane %v695, %v699
    %v702 = vsel %vm84, %v690, 0
    %v705 = vsel %vm255, %v689, 0
    %707 = vmatprep.subr.mxu0 0.0
    %708 = vmatpush1.msra.mxu0 %v687
    %709 = vmatprep.subr.mxu0 0.0
    %710 = vmatpush1.msra.mxu0 %v688
    %711 = vmatprep.subr.mxu0 0.0
    %712 = vmatpush1.msra.mxu0 %v705
    %713 = vmatprep.subr.mxu0 0.0
    %714 = vmatpush1.msra.mxu0 0.0
    %715 = vmatprep.subr.mxu0 0.0
    %716 = vmatpush1.msra.mxu0 0.0
    %717 = vmatprep.subr.mxu0 0.0
    %718 = vmatpush1.msra.mxu0 0.0
    %719 = vmatprep.subr.mxu0 0.0
    %720 = vmatpush1.msra.mxu0 0.0
    %721 = vmatprep.subr.mxu0 0.0
    %722 = vmatpush1.msra.mxu0 0.0
    %723 = vmatprep.subr.mxu0 0.0
    %724 = vmatpush1.msra.mxu0 0.0
    %725 = vmatprep.subr.mxu0 0.0
    %726 = vmatpush1.msra.mxu0 0.0
    %727 = vmatprep.subr.mxu0 0.0
    %728 = vmatpush1.msra.mxu0 0.0
    %729 = vmatprep.subr.mxu0 0.0
    %730 = vmatpush1.msra.mxu0 0.0
    %731 = vmatprep.subr.mxu0 0.0
    %732 = vmatpush1.msra.mxu0 0.0
    %733 = vmatprep.subr.mxu0 0.0
    %734 = vmatpush1.msra.mxu0 0.0
    %735 = vmatprep.subr.mxu0 0.0
    %736 = vmatpush1.msra.mxu0 0.0
    %737 = vmatprep.subr.mxu0 0.0
    %738 = vmatpush1.msra.mxu0 0.0
    %739 = vmatprep.subr.mxu0 0.0
    %740 = vmatpush1.msra.mxu0 0.0
    %741 = vmatprep.subr.mxu0 0.0
    %742 = vmatpush1.msra.mxu0 0.0
    %743 = vmatprep.subr.mxu0 0.0
    %744 = vmatpush1.msra.mxu0 0.0
    %745 = vmatprep.subr.mxu0 0.0
    %746 = vmatpush1.msra.mxu0 0.0
    %747 = vmatprep.subr.mxu0 0.0
    %748 = vmatpush1.msra.mxu0 0.0
    %749 = vmatprep.subr.mxu0 0.0
    %750 = vmatpush1.msra.mxu0 0.0
    %751 = vmatprep.subr.mxu0 0.0
    %752 = vmatpush1.msra.mxu0 0.0
    %753 = vmatprep.subr.mxu0 0.0
    %754 = vmatpush1.msra.mxu0 0.0
    %755 = vmatprep.subr.mxu0 0.0
    %756 = vmatpush1.msra.mxu0 0.0
    %757 = vmatprep.subr.mxu0 0.0
    %758 = vmatpush1.msra.mxu0 0.0
    %759 = vmatprep.subr.mxu0 0.0
    %760 = vmatpush1.msra.mxu0 0.0
    %761 = vmatprep.subr.mxu0 0.0
    %762 = vmatpush1.msra.mxu0 0.0
    %763 = vmatprep.subr.mxu0 0.0
    %764 = vmatpush1.msra.mxu0 0.0
    %765 = vmatprep.subr.mxu0 0.0
    %766 = vmatpush1.msra.mxu0 0.0
    %767 = vmatprep.subr.mxu0 0.0
    %768 = vmatpush1.msra.mxu0 0.0
    %769 = vmatprep.subr.mxu0 0.0
    %770 = vmatpush1.msra.mxu0 0.0
    %771 = vmatprep.mubr.f32.mxu0 0.0
    %772 = vmatmul.mubr.f32.gmra.mrb[0].mxu0 %v702
    %v773 = vpop.f32.mrb[0].mxu0
    %v774 = vadd.f32 %v700, %v773
    %v775 = vpop.f32.mrb[0].mxu0
    %776 = vdwg.mxu0
    %v777 = vmax.f32 %v774, 0.0
    %778 = vst [vmem:[#allocation3] sm:$0x1] %v777
    // Predicated region
    $region54: #{tpu_custom_call.1} parent=1 // pred_check
      _
    $region55: #{tpu_custom_call.1} parent=1 // pred_check_branch
      %780 = sbr.rel (0) target = $region57
    $region56: #{tpu_custom_call.1} parent=1 // pred_region
      %s782 = ssub.s32 16, 16
      %783 = vsyncadd [#allocation4], %s782
      %s785 = sshll.u32 [#allocation3], 4
      %s786 = int_to_ptr.vmem [resolvable:$true] %s785
      %788 = dma.vmem_to_hbm [thread:$0]  %s786, 16, %s13, [#allocation4]
    $region57: #{tpu_custom_call.1} parent=1 // pred_fallthru
      _
    // Predicated region
    $region58: #{tpu_custom_call.1} parent=1 // pred_check
      _
    $region59: #{tpu_custom_call.1} parent=1 // pred_check_branch
      %790 = sbr.rel (0) target = $region61
    $region60: #{tpu_custom_call.1} parent=1 // pred_region
      %791 = dma.done [#allocation4], 16
    $region61: #{tpu_custom_call.1} parent=1 // pred_fallthru
      _
    %792 = vsyncpa [#allocation4], 1

</llo_original>
